<compile_context>
chip_gen: v7x
topology: tpu7x:2x2x1
jax: 0.10.0
libtpu: 0.0.40
codegen_flags: <defaults>
</compile_context>

<pallas_src>
import functools

import jax
import jax.numpy as jnp
from jax.experimental import pallas as pl
from jax.experimental.pallas import tpu as pltpu


_SUBLANE = {4: 8, 2: 16, 1: 32}   # sublane packing per dtype byte width


def _round_up(x, m):
    return -(-x // m) * m


def _vmem_capacity_bytes():
    try:
        info = pltpu.get_tpu_info()
        cap = getattr(info, "vmem_capacity_bytes", None)
        if cap:
            return int(cap)
    except Exception:
        pass
    return 64 * 1024 * 1024           # conservative (v7x-sized) default


def _budgets():
    """(max input-block bytes, vmem_limit cap) per TPU generation."""
    cap = _vmem_capacity_bytes()
    if cap <= 96 * 1024 * 1024:        # v7x-class: 64 MiB VMEM per TensorCore
        return 6 * 1024 * 1024, 36 * 1024 * 1024
    return 12 * 1024 * 1024, 72 * 1024 * 1024   # v5e / v6e: 128 MiB VMEM


# ---------------------------------------------------------------------------
# Kernels
# ---------------------------------------------------------------------------

def _gap_kernel_small(x_ref, o_ref, *, inv_hw, use_dot):
    """hw <= 256: whole spatial extent in one (<=2-vreg-wide) block.

    Row sums go through the MXU (ones-matmul) so the hot path issues no
    per-vreg cross-lane reduce on the XLU -- important at v7x HBM rates.
    """
    x = x_ref[...]
    if use_dot:
        ones = jnp.ones((x.shape[-1], 1), dtype=x.dtype)
        s = jnp.dot(x, ones, preferred_element_type=jnp.float32)
    else:  # degenerate tiny hw
        s = jnp.sum(x.astype(jnp.float32), axis=-1, keepdims=True)
    o_ref[...] = (s * inv_hw).astype(o_ref.dtype)


def _gap_kernel_wide(x_ref, o_ref, *, inv_hw, hw):
    """256 < hw <= col_cap: one full-width block per row tile.

    128-lane strips are widened to f32 and accumulated with plain VPU adds;
    a single cross-lane reduce per row block happens at the end.
    """
    n_full = hw // 128
    acc = x_ref[:, 0:128].astype(jnp.float32)
    for s in range(1, n_full):
        acc = acc + x_ref[:, s * 128:(s + 1) * 128].astype(jnp.float32)
    total = jnp.sum(acc, axis=-1, keepdims=True)
    tail = hw - n_full * 128
    if tail:
        total = total + jnp.sum(
            x_ref[:, n_full * 128:hw].astype(jnp.float32),
            axis=-1, keepdims=True)
    o_ref[...] = (total * inv_hw).astype(o_ref.dtype)


def _gap_kernel_multi(x_ref, o_ref, acc_ref, *, inv_hw, hw, col_tile):
    """hw > col_cap: 2-D grid; columns (reduction axis) iterate last.

    acc_ref is a (row_tile, 128) f32 strip accumulator (VPU adds only); the
    single cross-lane reduce + inv_hw multiply happens at the last column step.
    The ragged last column chunk (hw % col_tile) is masked in-kernel.
    """
    k = pl.program_id(1)
    nk = pl.num_programs(1)

    @pl.when(k == 0)
    def _():
        acc_ref[...] = jnp.zeros_like(acc_ref)

    rem = hw % col_tile

    def accumulate(valid_cols):
        acc = acc_ref[...]
        n_full = valid_cols // 128
        for s in range(n_full):
            acc = acc + x_ref[:, s * 128:(s + 1) * 128].astype(jnp.float32)
        tail = valid_cols - n_full * 128
        if tail:
            strip = x_ref[:, n_full * 128:(n_full + 1) * 128].astype(jnp.float32)
            lane = jax.lax.broadcasted_iota(jnp.int32, strip.shape, 1)
            acc = acc + jnp.where(lane < tail, strip, 0.0)
        acc_ref[...] = acc

    if rem == 0:
        accumulate(col_tile)
    else:
        @pl.when(k < nk - 1)
        def _():
            accumulate(col_tile)

        @pl.when(k == nk - 1)
        def _():
            accumulate(rem)

    @pl.when(k == nk - 1)
    def _():
        total = jnp.sum(acc_ref[...], axis=-1, keepdims=True)
        o_ref[...] = (total * inv_hw).astype(o_ref.dtype)


# ---------------------------------------------------------------------------
# Wrapper
# ---------------------------------------------------------------------------

def global_avg_pool2d(x, *, max_block_bytes=None, vmem_cap_bytes=None,
                      col_cap=2048):
    """Equivalent of F.avg_pool2d(x, kernel_size=x.shape[2:]) for NCHW x."""
    n, c, h, w = x.shape
    nc, hw = n * c, h * w
    inv_hw = 1.0 / float(hw)
    dtype_bytes = jnp.dtype(x.dtype).itemsize
    sublane = _SUBLANE.get(dtype_bytes, 8)

    default_block, default_vmem = _budgets()
    if max_block_bytes is None:
        max_block_bytes = default_block
    if vmem_cap_bytes is None:
        vmem_cap_bytes = default_vmem

    x2d = x.reshape(nc, hw)

    multi = hw > col_cap
    if multi:
        col_tile = max(128, (col_cap // 128) * 128)
        padded_w = col_tile
    else:
        col_tile = hw
        padded_w = _round_up(hw, 128)

    # Row tile from the VMEM block budget, accounting for 128-lane padding.
    budget_rows = max_block_bytes // (padded_w * dtype_bytes)
    budget_rows = max(sublane, (budget_rows // sublane) * sublane)
    # Keep >= ~8 row-grid steps so megacore parts stay busy and the pipeline
    # has something to overlap; soft cap the tile at 32768 rows.
    rows_for_8_steps = _round_up(pl.cdiv(nc, 8), sublane)
    row_tile = max(sublane, min(budget_rows, rows_for_8_steps, 32768))
    num_row_tiles = pl.cdiv(nc, row_tile)

    # VMEM estimate with lane padding: double-buffered input + (lane-padded)
    # output blocks + the f32 strip accumulator (multi path only).
    est_bytes = (2 * row_tile * padded_w * dtype_bytes
                 + 2 * row_tile * 128 * dtype_bytes
                 + (row_tile * 128 * 4 if multi else 0))
    vmem_limit = int(min(vmem_cap_bytes,
                         max(16 * 1024 * 1024, est_bytes + (4 << 20))))

    if not multi:
        if hw <= 256:
            kernel = functools.partial(_gap_kernel_small, inv_hw=inv_hw,
                                       use_dot=hw >= 8)
        else:
            kernel = functools.partial(_gap_kernel_wide, inv_hw=inv_hw, hw=hw)
        grid = (num_row_tiles,)
        in_specs = [pl.BlockSpec((row_tile, hw), lambda i: (i, 0))]
        out_specs = pl.BlockSpec((row_tile, 1), lambda i: (i, 0))
        scratch_shapes = []
        dims = ("parallel",)
    else:
        num_col_tiles = pl.cdiv(hw, col_tile)
        kernel = functools.partial(_gap_kernel_multi, inv_hw=inv_hw, hw=hw,
                                   col_tile=col_tile)
        grid = (num_row_tiles, num_col_tiles)
        in_specs = [pl.BlockSpec((row_tile, col_tile), lambda i, k: (i, k))]
        out_specs = pl.BlockSpec((row_tile, 1), lambda i, k: (i, 0))
        scratch_shapes = [pltpu.VMEM((row_tile, 128), jnp.float32)]
        dims = ("parallel", "arbitrary")

    out2d = pl.pallas_call(
        kernel,
        out_shape=jax.ShapeDtypeStruct((nc, 1), x.dtype),
        grid_spec=pltpu.PrefetchScalarGridSpec(
            num_scalar_prefetch=0,
            grid=grid,
            in_specs=in_specs,
            out_specs=out_specs,
            scratch_shapes=scratch_shapes,
        ),
        compiler_params=pltpu.CompilerParams(
            dimension_semantics=dims,
            vmem_limit_bytes=vmem_limit,
        ),
    )(x2d)

    return out2d.reshape(n, c, 1, 1)


if __name__ == "__main__":
    key = jax.random.PRNGKey(0)
    keys = jax.random.split(key, 8)

    def _check(x, atol, **kwargs):
        out = global_avg_pool2d(x, **kwargs)
        jax.block_until_ready(out)
        ref = jnp.mean(x.astype(jnp.float32), axis=(2, 3), keepdims=True)
        assert out.shape == x.shape[:2] + (1, 1), out.shape
        assert out.dtype == x.dtype, out.dtype
        err = jnp.max(jnp.abs(out.astype(jnp.float32) - ref))
        assert jnp.allclose(out.astype(jnp.float32), ref,
                            atol=atol, rtol=atol), float(err)

    # MXU row-sum path (hw = 256), canonical small case.
    _check(jax.random.normal(keys[0], (2, 4, 16, 16), dtype=jnp.float32), 1e-5)
    # Ragged row count (N*C = 3, not a sublane multiple) -- no input padding.
    _check(jax.random.normal(keys[1], (1, 3, 16, 16), dtype=jnp.float32), 1e-5)
    # hw < 128 (lane-padded input block), MXU path.
    _check(jax.random.normal(keys[2], (2, 4, 8, 8), dtype=jnp.float32), 1e-5)
    # Strip-accumulate path (256 < hw <= col_cap), single column block.
    _check(jax.random.normal(keys[3], (2, 3, 16, 32), dtype=jnp.float32), 1e-5)
    # Multi-column-block path with a ragged last column chunk (hw=400, col=256).
    _check(jax.random.normal(keys[4], (2, 3, 20, 20), dtype=jnp.float32), 1e-5,
           col_cap=256)
    # bf16, MXU path (exact bf16 ones-matmul accumulated in f32).
    _check(jax.random.normal(keys[5], (2, 4, 8, 16), dtype=jnp.bfloat16), 2e-2)
    # bf16, multi-column-block path (hw=384, col=256, rem=128).
    _check(jax.random.normal(keys[6], (2, 5, 16, 24), dtype=jnp.bfloat16), 2e-2,
           col_cap=256)

    print("KERNEL_OK")
</pallas_src>

<mosaic_0001>
module attributes {stable_mosaic.version = 11 : i64} {
  func.func @_gap_kernel_small(%arg0: i32, %arg1: memref<8x256xf32, #tpu.memory_space<vmem>>, %arg2: memref<8x1xf32, #tpu.memory_space<vmem>>) attributes {dimension_semantics = [#tpu.dimension_semantics<parallel>], iteration_bounds = array<i64: 1>, scalar_prefetch = 0 : i64, scratch_operands = 0 : i64, tpu.core_type = #tpu.core_type<tc>, window_params = [{transform_indices = @transform_0, window_bounds = array<i64: 8, 256>}, {transform_indices = @transform_1, window_bounds = array<i64: 8, 1>}]} {
    %c0 = arith.constant 0 : index
    %c0_0 = arith.constant 0 : index
    %0 = vector.load %arg1[%c0, %c0_0] : memref<8x256xf32, #tpu.memory_space<vmem>>, vector<8x256xf32>
    %cst = arith.constant 1.000000e+00 : f32
    %1 = vector.broadcast %cst : f32 to vector<256x1xf32>
    %cst_1 = arith.constant dense<0.000000e+00> : vector<8x1xf32>
    %2 = tpu.matmul %0, %1, %cst_1 {dimension_numbers = #tpu.dot_dimension_numbers<[1], [0], [0], [1], [0, 0, 1, 1], [], []>} : vector<8x256xf32>, vector<256x1xf32>, vector<8x1xf32> -> vector<8x1xf32>
    %cst_2 = arith.constant 3.906250e-03 : f32
    %3 = vector.broadcast %cst_2 : f32 to vector<8x1xf32>
    %4 = arith.mulf %2, %3 : vector<8x1xf32>
    %c0_3 = arith.constant 0 : index
    %c0_4 = arith.constant 0 : index
    %5 = vector.load %arg2[%c0_3, %c0_4] : memref<8x1xf32, #tpu.memory_space<vmem>>, vector<8x1xf32>
    tpu.vector_store %arg2[%c0_3, %c0_4], %4 {strides = array<i32>} : memref<8x1xf32, #tpu.memory_space<vmem>>, vector<8x1xf32>,
    return
  }
  func.func @transform_0(%arg0: i32) -> (i32, i32) {
    %c0_i32 = arith.constant 0 : i32
    %c0_i32_0 = arith.constant 0 : i32
    return %arg0, %c0_i32 : i32, i32
  }
  func.func @transform_1(%arg0: i32) -> (i32, i32) {
    %c0_i32 = arith.constant 0 : i32
    %c0_i32_0 = arith.constant 0 : i32
    return %arg0, %c0_i32 : i32, i32
  }
}

</mosaic_0001>

<llo_original>
// kernel: tpu_custom_call.1
$region0: #{tpu_custom_call.1}
  #allocation0 [shape = 'u32[]', space=smem, size = 0x4, offset = 0x4, fixed_abs, tag = 'smem constant byte address 0x4 - core index']
  #allocation1 [shape = 'u32[144,128]{1,0:T(1,128)}', space=vmem, size = 0x12000, scoped, tag = 'internal scratch']
  %s0 = inlined_call_operand.hbm [shape: f32[8,256], index: 0, kind: input, shape index: {}]
  %s1 = inlined_call_operand.vmem [shape: f32[8,1], index: 1, kind: output, shape index: {}]
  %s2 = sld [smem:[#allocation0]]
  $region18: #{tpu_custom_call.1} parent=0
    _
  %s4 = ssub.s32 1, %s2
  %s5 = scalar_select 0, %s4, %s2
  $region1: #{tpu_custom_call.1} parent=0
    #allocation2 [shape = 'u8[8192]{0}', space=vmem, size = 0x2000, scoped, tag = 'input window, operand 0, single buffered']
    #allocation3 [shape = 's32[1]{0}', space=sflag, size = 0x4, scoped, tag = 'scoped memory for tpu_custom_call.1']
    %6 = vsyncpa [#allocation3], 0
    // Predicated region
    $region2: #{tpu_custom_call.1} parent=1 // pred_check
      _
    $region3: #{tpu_custom_call.1} parent=1 // pred_check_branch
      %8 = sbr.rel (0) target = $region5
    $region4: #{tpu_custom_call.1} parent=1 // pred_region
      %s10 = ssub.s32 256, 256
      %11 = vsyncadd [#allocation3], %s10
      %s13 = sshll.u32 [#allocation2], 4
      %s14 = int_to_ptr.vmem [resolvable:$true] %s13
      %16 = dma.hbm_to_vmem [thread:$0]  %s0, 256, %s14, [#allocation3]
    $region5: #{tpu_custom_call.1} parent=1 // pred_fallthru
      _
    // Predicated region
    $region6: #{tpu_custom_call.1} parent=1 // pred_check
      _
    $region7: #{tpu_custom_call.1} parent=1 // pred_check_branch
      %18 = sbr.rel (0) target = $region9
    $region8: #{tpu_custom_call.1} parent=1 // pred_region
      %19 = dma.done [#allocation3], 256
    $region9: #{tpu_custom_call.1} parent=1 // pred_fallthru
      _
    %v20 = vld [vmem:[#allocation2] sm:$0xff]
    %v21 = vld [vmem:[#allocation2 + $0x8] sm:$0xff]
    %22 = vmatprep.subr.mxu0 0.0
    %23 = vmatpush1.msra.mxu0 1.0
    %24 = vmatprep.subr.mxu0 0.0
    %25 = vmatpush1.msra.mxu0 1.0
    %26 = vmatprep.subr.mxu0 0.0
    %27 = vmatpush1.msra.mxu0 1.0
    %28 = vmatprep.subr.mxu0 0.0
    %29 = vmatpush1.msra.mxu0 1.0
    %30 = vmatprep.subr.mxu0 0.0
    %31 = vmatpush1.msra.mxu0 1.0
    %32 = vmatprep.subr.mxu0 0.0
    %33 = vmatpush1.msra.mxu0 1.0
    %34 = vmatprep.subr.mxu0 0.0
    %35 = vmatpush1.msra.mxu0 1.0
    %36 = vmatprep.subr.mxu0 0.0
    %37 = vmatpush1.msra.mxu0 1.0
    %38 = vmatprep.subr.mxu0 0.0
    %39 = vmatpush1.msra.mxu0 1.0
    %40 = vmatprep.subr.mxu0 0.0
    %41 = vmatpush1.msra.mxu0 1.0
    %42 = vmatprep.subr.mxu0 0.0
    %43 = vmatpush1.msra.mxu0 1.0
    %44 = vmatprep.subr.mxu0 0.0
    %45 = vmatpush1.msra.mxu0 1.0
    %46 = vmatprep.subr.mxu0 0.0
    %47 = vmatpush1.msra.mxu0 1.0
    %48 = vmatprep.subr.mxu0 0.0
    %49 = vmatpush1.msra.mxu0 1.0
    %50 = vmatprep.subr.mxu0 0.0
    %51 = vmatpush1.msra.mxu0 1.0
    %52 = vmatprep.subr.mxu0 0.0
    %53 = vmatpush1.msra.mxu0 1.0
    %54 = vmatprep.subr.mxu0 0.0
    %55 = vmatpush1.msra.mxu0 1.0
    %56 = vmatprep.subr.mxu0 0.0
    %57 = vmatpush1.msra.mxu0 1.0
    %58 = vmatprep.subr.mxu0 0.0
    %59 = vmatpush1.msra.mxu0 1.0
    %60 = vmatprep.subr.mxu0 0.0
    %61 = vmatpush1.msra.mxu0 1.0
    %62 = vmatprep.subr.mxu0 0.0
    %63 = vmatpush1.msra.mxu0 1.0
    %64 = vmatprep.subr.mxu0 0.0
    %65 = vmatpush1.msra.mxu0 1.0
    %66 = vmatprep.subr.mxu0 0.0
    %67 = vmatpush1.msra.mxu0 1.0
    %68 = vmatprep.subr.mxu0 0.0
    %69 = vmatpush1.msra.mxu0 1.0
    %70 = vmatprep.subr.mxu0 0.0
    %71 = vmatpush1.msra.mxu0 1.0
    %72 = vmatprep.subr.mxu0 0.0
    %73 = vmatpush1.msra.mxu0 1.0
    %74 = vmatprep.subr.mxu0 0.0
    %75 = vmatpush1.msra.mxu0 1.0
    %76 = vmatprep.subr.mxu0 0.0
    %77 = vmatpush1.msra.mxu0 1.0
    %78 = vmatprep.subr.mxu0 0.0
    %79 = vmatpush1.msra.mxu0 1.0
    %80 = vmatprep.subr.mxu0 0.0
    %81 = vmatpush1.msra.mxu0 1.0
    %82 = vmatprep.subr.mxu0 0.0
    %83 = vmatpush1.msra.mxu0 1.0
    %84 = vmatprep.subr.mxu0 0.0
    %85 = vmatpush1.msra.mxu0 1.0
    %86 = vmatprep.mubr.f32.mxu0 %v21
    %87 = vmatmul.mubr.f32.gmra.mrb[0].mxu0 %v20
    %v88 = vpop.f32.mrb[0].mxu0
    %v89 = vadd.f32 0.0, %v88
    %v90 = vpop.f32.mrb[0].mxu0
    %91 = vdwg.mxu0
    %v92 = vmul.f32 %v89, 0.00390625
    %vm93 = vcmask 7168
    %94 = vst.msk [vmem:[%s1] sm:$0xff] %vm93, %v92
    // Predicated region
    $region10: #{tpu_custom_call.1} parent=1 // pred_check
      _
    $region11: #{tpu_custom_call.1} parent=1 // pred_check_branch
      %96 = sbr.rel (0) target = $region13
    $region12: #{tpu_custom_call.1} parent=1 // pred_region
      _
    $region13: #{tpu_custom_call.1} parent=1 // pred_fallthru
      _
    // Predicated region
    $region14: #{tpu_custom_call.1} parent=1 // pred_check
      _
    $region15: #{tpu_custom_call.1} parent=1 // pred_check_branch
      %98 = sbr.rel (0) target = $region17
    $region16: #{tpu_custom_call.1} parent=1 // pred_region
      _
    $region17: #{tpu_custom_call.1} parent=1 // pred_fallthru
      _
    %99 = vsyncpa [#allocation3], 1

</llo_original>
